<compile_context>
chip_gen: v5e
topology: v5e:2x2
jax: 0.10.0
libtpu: 0.0.40
codegen_flags: <defaults>
</compile_context>

<pallas_src>
import functools

import jax
import jax.numpy as jnp
import numpy as np
from jax import lax
from jax.experimental import pallas as pl
from jax.experimental.pallas import tpu as pltpu

# ----------------------------- configuration --------------------------------
N = 2            # batch
C = 8            # in_channels == planes (residual add requires in == out)
H = 16
W = 16
GROUPS = 4
CG = C // GROUPS             # channels per group (power of two)
HW = H * W                   # spatial size per image (power of two)
EPS = 1e-5


# ------------------------------- the kernel ---------------------------------
def conv_groups_kernel(x_ref, wbd_ref, w1_ref, pvec_ref, o_ref, *, mxu_dtype):
    """One grid step == `bb` images laid side-by-side on the lane axis.

    x_ref   : (C, bb*HW) f32  input block, images batched onto the lane axis
    wbd_ref : (C, 9*C)   mxu  block-diagonal grouped 3x3 conv weight; column
                              block k = ky*3 + kx holds W[:, :, ky, kx]
    w1_ref  : (C, C)     mxu  1x1 conv weight
    pvec_ref: (C, 5)     f32  packed per-channel params
                              [3x3 bias, gamma, beta, PReLU alpha, 1x1 bias]
    o_ref   : (C, bb*HW) f32  output block
    """
    L = x_ref.shape[1]
    bb = L // HW

    # ---- static lane masks for the reflect boundary, per image (& (HW-1)) ---
    lane = lax.broadcasted_iota(jnp.int32, (C, L), 1)
    pos = jnp.bitwise_and(lane, HW - 1)       # position inside each image
    is_row0 = pos < W                         # first image row
    is_rowN = pos >= HW - W                   # last image row
    col = jnp.bitwise_and(pos, W - 1)         # W is a power of two
    is_col0 = col == 0
    is_colN = col == W - 1

    # ---- packed per-channel params ------------------------------------------
    bias_g = pvec_ref[:, 0:1]                 # grouped 3x3 conv bias   (C, 1)
    gamma = pvec_ref[:, 1:2]                  # instance-norm scale     (C, 1)
    beta = pvec_ref[:, 2:3]                   # instance-norm shift     (C, 1)
    alpha = pvec_ref[:, 3:4]                  # PReLU slope per group   (C, 1)
    b1 = pvec_ref[:, 4:5]                     # 1x1 conv bias           (C, 1)

    # static per-channel instance-norm mask: only even group indices get it.
    ch = lax.broadcasted_iota(jnp.int32, (C, 1), 0)
    norm_on = jnp.bitwise_and(ch, 2 * CG - 1) < CG    # CG is a power of two

    x = x_ref[...]                                              # (C, L) f32

    # ---- row shifts with reflect (cross-image wrap lanes are masked away) ---
    up = pltpu.roll(x, shift=W, axis=1)                         # row y <- y-1
    down = pltpu.roll(x, shift=L - W, axis=1)                   # row y <- y+1
    rows = (jnp.where(is_row0, down, up),                       # dy = -1
            x,                                                  # dy =  0
            jnp.where(is_rowN, up, down))                       # dy = +1

    # ---- column shifts with reflect; stack the 9 operands (no VMEM scratch) -
    chunks = []
    for z in rows:
        left = pltpu.roll(z, shift=1, axis=1)                   # col x <- x-1
        right = pltpu.roll(z, shift=L - 1, axis=1)              # col x <- x+1
        chunks.append(jnp.where(is_col0, right, left))          # dx = -1
        chunks.append(z)                                        # dx =  0
        chunks.append(jnp.where(is_colN, left, right))          # dx = +1
    xs = jnp.concatenate(chunks, axis=0).astype(mxu_dtype)      # (9*C, L)

    # ---- all grouped 3x3 convs, all images: ONE block-diagonal MXU matmul ---
    conv = jnp.dot(wbd_ref[...], xs,
                   preferred_element_type=jnp.float32) + bias_g   # (C, L) f32

    # ---- per-image instance norm (even groups only) + PReLU, fused stats ----
    inv_hw = 1.0 / HW
    y_chunks = []
    for b in range(bb):
        cb = conv[:, b * HW:(b + 1) * HW]     # HW = 256 -> tile-aligned slice
        s1 = jnp.sum(cb, axis=1, keepdims=True)                  # (C, 1)
        s2 = jnp.sum(cb * cb, axis=1, keepdims=True)             # (C, 1)
        mean = s1 * inv_hw
        var = jnp.maximum(s2 * inv_hw - mean * mean, 0.0)        # f32, clamped
        grstd = gamma * lax.rsqrt(var + EPS)
        scale = jnp.where(norm_on, grstd, 1.0)
        shift = jnp.where(norm_on, beta - mean * grstd, 0.0)
        yb = cb * scale + shift
        y_chunks.append(jnp.where(yb >= 0.0, yb, alpha * yb))    # PReLU
    y = jnp.concatenate(y_chunks, axis=1) if bb > 1 else y_chunks[0]

    # ---- 1x1 conv over all images at once + bias + residual -----------------
    out = jnp.dot(w1_ref[...], y.astype(mxu_dtype),
                  preferred_element_type=jnp.float32)
    o_ref[...] = out + b1 + x


# ------------------------------ python wrapper -------------------------------
def _batch_block(n_batch: int) -> int:
    """Images per grid step.

    Multi-TensorCore chips (v4 / v5p / v7x-class): 1 image per step so
    dimension_semantics=("parallel",) shards images across cores.
    Single-TC chips (v5e / v6e): whole batch (capped at 8) in one grid step,
    one wide lane-batched matmul.  Perf-only heuristic.
    """
    try:
        kind = jax.devices()[0].device_kind.lower()
    except Exception:
        kind = ""
    single_tc = any(t in kind for t in ("v5e", "v5 lite", "v6e", "v6 lite"))
    multi_tc = any(t in kind for t in ("v7", "7x", "v4", "v5p", "v5 p"))
    if multi_tc and not single_tc:
        return 1
    bb = min(n_batch, 8)
    while n_batch % bb:
        bb -= 1
    return bb


@functools.partial(jax.jit, static_argnames=("bb", "mxu_dtype"))
def conv_groups_pallas(x, wbd, w1, pvec, *, bb, mxu_dtype):
    n = x.shape[0]
    # lane-dense layout plumbing (XLA side): (N, C, H, W) -> (C, N*HW)
    xf = x.reshape(n, C, HW).transpose(1, 0, 2).reshape(C, n * HW)
    L = bb * HW
    grid = (n // bb,)

    flops = n * HW * (2 * (9 * C * C + C * C) + 16 * C)
    bytes_accessed = 2 * n * C * HW * 4 + (wbd.size + w1.size + pvec.size) * 4

    out = pl.pallas_call(
        functools.partial(conv_groups_kernel, mxu_dtype=mxu_dtype),
        out_shape=jax.ShapeDtypeStruct((C, n * HW), jnp.float32),
        grid_spec=pltpu.PrefetchScalarGridSpec(
            num_scalar_prefetch=0,
            grid=grid,
            in_specs=[
                pl.BlockSpec((C, L), lambda b: (0, b)),
                pl.BlockSpec((C, 9 * C), lambda b: (0, 0)),
                pl.BlockSpec((C, C), lambda b: (0, 0)),
                pl.BlockSpec((C, 5), lambda b: (0, 0)),
            ],
            out_specs=pl.BlockSpec((C, L), lambda b: (0, b)),
        ),
        compiler_params=pltpu.CompilerParams(
            dimension_semantics=("parallel",)),
        cost_estimate=pl.CostEstimate(
            flops=flops, transcendentals=n * C,
            bytes_accessed=bytes_accessed),
    )(xf, wbd.astype(mxu_dtype), w1.astype(mxu_dtype), pvec)

    return out.reshape(C, n, HW).transpose(1, 0, 2).reshape(n, C, H, W)


# --------------------------- parameter packing --------------------------------
def pack_params(wg4, bg, gamma, beta, alpha, w1, b1):
    """Build the block-diagonal 3x3 weight and the packed per-channel slab."""
    wg4_np = np.asarray(wg4)
    wbd = np.zeros((C, 9 * C), np.float32)
    for g in range(GROUPS):
        for ky in range(3):
            for kx in range(3):
                k = ky * 3 + kx
                wbd[g * CG:(g + 1) * CG,
                    k * C + g * CG:k * C + (g + 1) * CG] = wg4_np[g, :, :, ky, kx]

    pvec = np.stack([
        np.asarray(bg).reshape(C),              # grouped conv bias
        np.asarray(gamma).reshape(C),           # instance-norm scale
        np.asarray(beta).reshape(C),            # instance-norm shift
        np.repeat(np.asarray(alpha), CG),       # PReLU slope (per layer/group)
        np.asarray(b1).reshape(C),              # 1x1 conv bias
    ], axis=1).astype(np.float32)               # (C, 5)
    return jnp.asarray(wbd), jnp.asarray(pvec)


# -------------------------- pure-JAX reference -------------------------------
def conv_groups_ref(x, wg4, bg, gamma, beta, alpha, w1, b1):
    outs = []
    for g in range(GROUPS):
        xg = x[:, g * CG:(g + 1) * CG]
        xp = jnp.pad(xg, ((0, 0), (0, 0), (1, 1), (1, 1)), mode="reflect")
        conv = lax.conv_general_dilated(
            xp, wg4[g], (1, 1), "VALID",
            dimension_numbers=("NCHW", "OIHW", "NCHW"))
        conv = conv + bg[g].reshape(1, CG, 1, 1)
        if g % 2 == 0:  # InstanceNorm2d(affine=True) on even group indices
            mean = conv.mean(axis=(2, 3), keepdims=True)
            var = ((conv - mean) ** 2).mean(axis=(2, 3), keepdims=True)
            conv = (conv - mean) * lax.rsqrt(var + EPS)
            conv = conv * gamma[g].reshape(1, CG, 1, 1) + beta[g].reshape(1, CG, 1, 1)
        conv = jnp.where(conv >= 0.0, conv, alpha[g] * conv)
        outs.append(conv)
    feat = jnp.concatenate(outs, axis=1)
    out = lax.conv_general_dilated(
        feat, w1.reshape(C, C, 1, 1), (1, 1), "VALID",
        dimension_numbers=("NCHW", "OIHW", "NCHW"))
    return out + b1.reshape(1, C, 1, 1) + x


# ---------------------------------- main -------------------------------------
if __name__ == "__main__":
    key = jax.random.PRNGKey(0)
    kx_, kw, kb, kg, kbe, kw1, kb1 = jax.random.split(key, 7)

    # input
    x = jax.random.normal(kx_, (N, C, H, W), dtype=jnp.float32)

    # per-group 3x3 conv params (n=1, `groups` ConvLayers)
    wg4 = jax.random.normal(kw, (GROUPS, CG, CG, 3, 3), dtype=jnp.float32) * 0.3
    bg = jax.random.normal(kb, (GROUPS, CG), dtype=jnp.float32) * 0.1

    # InstanceNorm2d(affine=True) params, perturbed away from 1/0 init
    gamma = 1.0 + 0.1 * jax.random.normal(kg, (GROUPS, CG), dtype=jnp.float32)
    beta = 0.1 * jax.random.normal(kbe, (GROUPS, CG), dtype=jnp.float32)

    # PReLU: one scalar slope per ConvLayer (PyTorch default num_parameters=1)
    alpha = jnp.array([0.25, 0.2, 0.3, 0.15], dtype=jnp.float32)

    # final 1x1 conv (no relu, no norm)
    w1 = jax.random.normal(kw1, (C, C), dtype=jnp.float32) * 0.2
    b1 = jax.random.normal(kb1, (C,), dtype=jnp.float32) * 0.1

    wbd, pvec = pack_params(wg4, bg, gamma, beta, alpha, w1, b1)
    ref = conv_groups_ref(x, wg4, bg, gamma, beta, alpha, w1, b1)

    bb = _batch_block(N)

    # Exact-structure check: f32 MXU operands, tight tolerance.
    out_f32 = jax.block_until_ready(
        conv_groups_pallas(x, wbd, w1, pvec, bb=bb, mxu_dtype=jnp.float32))
    np.testing.assert_allclose(np.asarray(out_f32), np.asarray(ref),
                               rtol=1e-4, atol=1e-4)

    # Production path per review: bf16 MXU operands, f32 accumulation / norm.
    # bf16 operand rounding bounds the error; looser tolerance reflects that.
    out_bf16 = jax.block_until_ready(
        conv_groups_pallas(x, wbd, w1, pvec, bb=bb, mxu_dtype=jnp.bfloat16))
    np.testing.assert_allclose(np.asarray(out_bf16), np.asarray(ref),
                               rtol=2e-2, atol=2e-2)

    print("KERNEL_OK")
</pallas_src>

<mosaic_0001>
module attributes {stable_mosaic.version = 11 : i64} {
  func.func @conv_groups_kernel(%arg0: i32, %arg1: memref<8x512xf32, #tpu.memory_space<vmem>>, %arg2: memref<8x72xf32, #tpu.memory_space<vmem>>, %arg3: memref<8x8xf32, #tpu.memory_space<vmem>>, %arg4: memref<8x5xf32, #tpu.memory_space<vmem>>, %arg5: memref<8x512xf32, #tpu.memory_space<vmem>>) attributes {dimension_semantics = [#tpu.dimension_semantics<parallel>], iteration_bounds = array<i64: 1>, scalar_prefetch = 0 : i64, scratch_operands = 0 : i64, tpu.core_type = #tpu.core_type<tc>, window_params = [{transform_indices = @transform_0, window_bounds = array<i64: 8, 512>}, {pipeline_mode = #tpu.pipeline_mode<synchronous>, transform_indices = @transform_1, window_bounds = array<i64: 8, 72>}, {pipeline_mode = #tpu.pipeline_mode<synchronous>, transform_indices = @transform_2, window_bounds = array<i64: 8, 8>}, {pipeline_mode = #tpu.pipeline_mode<synchronous>, transform_indices = @transform_3, window_bounds = array<i64: 8, 5>}, {transform_indices = @transform_4, window_bounds = array<i64: 8, 512>}]} {
    %0 = tpu.iota {dimensions = array<i32: 1>} : vector<8x512xi32>
    %c255_i32 = arith.constant 255 : i32
    %1 = vector.broadcast %c255_i32 : i32 to vector<8x512xi32>
    %2 = arith.andi %0, %1 : vector<8x512xi32>
    %c16_i32 = arith.constant 16 : i32
    %3 = vector.broadcast %c16_i32 : i32 to vector<8x512xi32>
    %4 = arith.cmpi slt, %2, %3 : vector<8x512xi32>
    %c240_i32 = arith.constant 240 : i32
    %5 = vector.broadcast %c240_i32 : i32 to vector<8x512xi32>
    %6 = arith.cmpi sge, %2, %5 : vector<8x512xi32>
    %c15_i32 = arith.constant 15 : i32
    %7 = vector.broadcast %c15_i32 : i32 to vector<8x512xi32>
    %8 = arith.andi %2, %7 : vector<8x512xi32>
    %c0_i32 = arith.constant 0 : i32
    %9 = vector.broadcast %c0_i32 : i32 to vector<8x512xi32>
    %10 = arith.cmpi eq, %8, %9 : vector<8x512xi32>
    %c15_i32_0 = arith.constant 15 : i32
    %11 = vector.broadcast %c15_i32_0 : i32 to vector<8x512xi32>
    %12 = arith.cmpi eq, %8, %11 : vector<8x512xi32>
    %c0 = arith.constant 0 : index
    %c0_1 = arith.constant 0 : index
    %13 = vector.load %arg4[%c0, %c0_1] : memref<8x5xf32, #tpu.memory_space<vmem>>, vector<8x1xf32>
    %c0_2 = arith.constant 0 : index
    %c1 = arith.constant 1 : index
    %14 = vector.load %arg4[%c0_2, %c1] : memref<8x5xf32, #tpu.memory_space<vmem>>, vector<8x1xf32>
    %c0_3 = arith.constant 0 : index
    %c2 = arith.constant 2 : index
    %15 = vector.load %arg4[%c0_3, %c2] : memref<8x5xf32, #tpu.memory_space<vmem>>, vector<8x1xf32>
    %c0_4 = arith.constant 0 : index
    %c3 = arith.constant 3 : index
    %16 = vector.load %arg4[%c0_4, %c3] : memref<8x5xf32, #tpu.memory_space<vmem>>, vector<8x1xf32>
    %c0_5 = arith.constant 0 : index
    %c4 = arith.constant 4 : index
    %17 = vector.load %arg4[%c0_5, %c4] : memref<8x5xf32, #tpu.memory_space<vmem>>, vector<8x1xf32>
    %18 = tpu.iota {dimensions = array<i32: 0>} : vector<8x1xi32>
    %c3_i32 = arith.constant 3 : i32
    %19 = vector.broadcast %c3_i32 : i32 to vector<8x1xi32>
    %20 = arith.andi %18, %19 : vector<8x1xi32>
    %c2_i32 = arith.constant 2 : i32
    %21 = vector.broadcast %c2_i32 : i32 to vector<8x1xi32>
    %22 = arith.cmpi slt, %20, %21 : vector<8x1xi32>
    %c0_6 = arith.constant 0 : index
    %c0_7 = arith.constant 0 : index
    %23 = vector.load %arg1[%c0_6, %c0_7] : memref<8x512xf32, #tpu.memory_space<vmem>>, vector<8x512xf32>
    %c16_i32_8 = arith.constant 16 : i32
    %24 = tpu.dynamic_rotate %23 by %c16_i32_8 dim 1 : vector<8x512xf32>, i32 -> vector<8x512xf32>
    %c496_i32 = arith.constant 496 : i32
    %25 = tpu.dynamic_rotate %23 by %c496_i32 dim 1 : vector<8x512xf32>, i32 -> vector<8x512xf32>
    %26 = arith.select %4, %25, %24 : vector<8x512xi1>, vector<8x512xf32>
    %27 = arith.select %6, %24, %25 : vector<8x512xi1>, vector<8x512xf32>
    %c1_i32 = arith.constant 1 : i32
    %28 = tpu.dynamic_rotate %26 by %c1_i32 dim 1 : vector<8x512xf32>, i32 -> vector<8x512xf32>
    %c511_i32 = arith.constant 511 : i32
    %29 = tpu.dynamic_rotate %26 by %c511_i32 dim 1 : vector<8x512xf32>, i32 -> vector<8x512xf32>
    %30 = arith.select %10, %29, %28 : vector<8x512xi1>, vector<8x512xf32>
    %31 = arith.select %12, %28, %29 : vector<8x512xi1>, vector<8x512xf32>
    %c1_i32_9 = arith.constant 1 : i32
    %32 = tpu.dynamic_rotate %23 by %c1_i32_9 dim 1 : vector<8x512xf32>, i32 -> vector<8x512xf32>
    %c511_i32_10 = arith.constant 511 : i32
    %33 = tpu.dynamic_rotate %23 by %c511_i32_10 dim 1 : vector<8x512xf32>, i32 -> vector<8x512xf32>
    %34 = arith.select %10, %33, %32 : vector<8x512xi1>, vector<8x512xf32>
    %35 = arith.select %12, %32, %33 : vector<8x512xi1>, vector<8x512xf32>
    %c1_i32_11 = arith.constant 1 : i32
    %36 = tpu.dynamic_rotate %27 by %c1_i32_11 dim 1 : vector<8x512xf32>, i32 -> vector<8x512xf32>
    %c511_i32_12 = arith.constant 511 : i32
    %37 = tpu.dynamic_rotate %27 by %c511_i32_12 dim 1 : vector<8x512xf32>, i32 -> vector<8x512xf32>
    %38 = arith.select %10, %37, %36 : vector<8x512xi1>, vector<8x512xf32>
    %39 = arith.select %12, %36, %37 : vector<8x512xi1>, vector<8x512xf32>
    %40 = tpu.concatenate %30, %26, %31, %34, %23, %35, %38, %27, %39 in 0 : vector<8x512xf32>, vector<8x512xf32>, vector<8x512xf32>, vector<8x512xf32>, vector<8x512xf32>, vector<8x512xf32>, vector<8x512xf32>, vector<8x512xf32>, vector<8x512xf32> -> vector<72x512xf32>
    %c0_13 = arith.constant 0 : index
    %c0_14 = arith.constant 0 : index
    %41 = vector.load %arg2[%c0_13, %c0_14] : memref<8x72xf32, #tpu.memory_space<vmem>>, vector<8x72xf32>
    %cst = arith.constant dense<0.000000e+00> : vector<8x512xf32>
    %42 = tpu.matmul %41, %40, %cst {dimension_numbers = #tpu.dot_dimension_numbers<[1], [0], [0], [1], [0, 0, 1, 1], [], []>} : vector<8x72xf32>, vector<72x512xf32>, vector<8x512xf32> -> vector<8x512xf32>
    %43 = vector.broadcast %13 : vector<8x1xf32> to vector<8x512xf32>
    %44 = arith.addf %42, %43 : vector<8x512xf32>
    %45 = vector.extract_strided_slice %44 {offsets = [0, 0], sizes = [8, 256], strides = [1, 1]} : vector<8x512xf32> to vector<8x256xf32>
    %cst_15 = arith.constant dense<0.000000e+00> : vector<8xf32>
    %46 = vector.multi_reduction <add>, %45, %cst_15 [1] : vector<8x256xf32> to vector<8xf32>
    %47 = vector.shape_cast %46 : vector<8xf32> to vector<8x1xf32>
    %48 = arith.mulf %45, %45 : vector<8x256xf32>
    %cst_16 = arith.constant dense<0.000000e+00> : vector<8xf32>
    %49 = vector.multi_reduction <add>, %48, %cst_16 [1] : vector<8x256xf32> to vector<8xf32>
    %50 = vector.shape_cast %49 : vector<8xf32> to vector<8x1xf32>
    %cst_17 = arith.constant 3.906250e-03 : f32
    %51 = vector.broadcast %cst_17 : f32 to vector<8x1xf32>
    %52 = arith.mulf %47, %51 : vector<8x1xf32>
    %cst_18 = arith.constant 3.906250e-03 : f32
    %53 = vector.broadcast %cst_18 : f32 to vector<8x1xf32>
    %54 = arith.mulf %50, %53 : vector<8x1xf32>
    %55 = arith.mulf %52, %52 : vector<8x1xf32>
    %56 = arith.subf %54, %55 : vector<8x1xf32>
    %cst_19 = arith.constant 0.000000e+00 : f32
    %57 = vector.broadcast %cst_19 : f32 to vector<8x1xf32>
    %58 = arith.maximumf %56, %57 : vector<8x1xf32>
    %cst_20 = arith.constant 9.99999974E-6 : f32
    %59 = vector.broadcast %cst_20 : f32 to vector<8x1xf32>
    %60 = arith.addf %58, %59 : vector<8x1xf32>
    %61 = math.rsqrt %60 : vector<8x1xf32>
    %62 = arith.mulf %14, %61 : vector<8x1xf32>
    %cst_21 = arith.constant 1.000000e+00 : f32
    %63 = vector.broadcast %cst_21 : f32 to vector<8x1xf32>
    %64 = arith.select %22, %62, %63 : vector<8x1xi1>, vector<8x1xf32>
    %65 = arith.mulf %52, %62 : vector<8x1xf32>
    %66 = arith.subf %15, %65 : vector<8x1xf32>
    %cst_22 = arith.constant 0.000000e+00 : f32
    %67 = vector.broadcast %cst_22 : f32 to vector<8x1xf32>
    %68 = arith.select %22, %66, %67 : vector<8x1xi1>, vector<8x1xf32>
    %69 = vector.broadcast %64 : vector<8x1xf32> to vector<8x256xf32>
    %70 = arith.mulf %45, %69 : vector<8x256xf32>
    %71 = vector.broadcast %68 : vector<8x1xf32> to vector<8x256xf32>
    %72 = arith.addf %70, %71 : vector<8x256xf32>
    %cst_23 = arith.constant 0.000000e+00 : f32
    %73 = vector.broadcast %cst_23 : f32 to vector<8x256xf32>
    %74 = arith.cmpf oge, %72, %73 : vector<8x256xf32>
    %75 = vector.broadcast %16 : vector<8x1xf32> to vector<8x256xf32>
    %76 = arith.mulf %75, %72 : vector<8x256xf32>
    %77 = arith.select %74, %72, %76 : vector<8x256xi1>, vector<8x256xf32>
    %78 = vector.extract_strided_slice %44 {offsets = [0, 256], sizes = [8, 256], strides = [1, 1]} : vector<8x512xf32> to vector<8x256xf32>
    %cst_24 = arith.constant dense<0.000000e+00> : vector<8xf32>
    %79 = vector.multi_reduction <add>, %78, %cst_24 [1] : vector<8x256xf32> to vector<8xf32>
    %80 = vector.shape_cast %79 : vector<8xf32> to vector<8x1xf32>
    %81 = arith.mulf %78, %78 : vector<8x256xf32>
    %cst_25 = arith.constant dense<0.000000e+00> : vector<8xf32>
    %82 = vector.multi_reduction <add>, %81, %cst_25 [1] : vector<8x256xf32> to vector<8xf32>
    %83 = vector.shape_cast %82 : vector<8xf32> to vector<8x1xf32>
    %cst_26 = arith.constant 3.906250e-03 : f32
    %84 = vector.broadcast %cst_26 : f32 to vector<8x1xf32>
    %85 = arith.mulf %80, %84 : vector<8x1xf32>
    %cst_27 = arith.constant 3.906250e-03 : f32
    %86 = vector.broadcast %cst_27 : f32 to vector<8x1xf32>
    %87 = arith.mulf %83, %86 : vector<8x1xf32>
    %88 = arith.mulf %85, %85 : vector<8x1xf32>
    %89 = arith.subf %87, %88 : vector<8x1xf32>
    %cst_28 = arith.constant 0.000000e+00 : f32
    %90 = vector.broadcast %cst_28 : f32 to vector<8x1xf32>
    %91 = arith.maximumf %89, %90 : vector<8x1xf32>
    %cst_29 = arith.constant 9.99999974E-6 : f32
    %92 = vector.broadcast %cst_29 : f32 to vector<8x1xf32>
    %93 = arith.addf %91, %92 : vector<8x1xf32>
    %94 = math.rsqrt %93 : vector<8x1xf32>
    %95 = arith.mulf %14, %94 : vector<8x1xf32>
    %cst_30 = arith.constant 1.000000e+00 : f32
    %96 = vector.broadcast %cst_30 : f32 to vector<8x1xf32>
    %97 = arith.select %22, %95, %96 : vector<8x1xi1>, vector<8x1xf32>
    %98 = arith.mulf %85, %95 : vector<8x1xf32>
    %99 = arith.subf %15, %98 : vector<8x1xf32>
    %cst_31 = arith.constant 0.000000e+00 : f32
    %100 = vector.broadcast %cst_31 : f32 to vector<8x1xf32>
    %101 = arith.select %22, %99, %100 : vector<8x1xi1>, vector<8x1xf32>
    %102 = vector.broadcast %97 : vector<8x1xf32> to vector<8x256xf32>
    %103 = arith.mulf %78, %102 : vector<8x256xf32>
    %104 = vector.broadcast %101 : vector<8x1xf32> to vector<8x256xf32>
    %105 = arith.addf %103, %104 : vector<8x256xf32>
    %cst_32 = arith.constant 0.000000e+00 : f32
    %106 = vector.broadcast %cst_32 : f32 to vector<8x256xf32>
    %107 = arith.cmpf oge, %105, %106 : vector<8x256xf32>
    %108 = vector.broadcast %16 : vector<8x1xf32> to vector<8x256xf32>
    %109 = arith.mulf %108, %105 : vector<8x256xf32>
    %110 = arith.select %107, %105, %109 : vector<8x256xi1>, vector<8x256xf32>
    %111 = tpu.concatenate %77, %110 in 1 : vector<8x256xf32>, vector<8x256xf32> -> vector<8x512xf32>
    %c0_33 = arith.constant 0 : index
    %c0_34 = arith.constant 0 : index
    %112 = vector.load %arg3[%c0_33, %c0_34] : memref<8x8xf32, #tpu.memory_space<vmem>>, vector<8x8xf32>
    %cst_35 = arith.constant dense<0.000000e+00> : vector<8x512xf32>
    %113 = tpu.matmul %112, %111, %cst_35 {dimension_numbers = #tpu.dot_dimension_numbers<[1], [0], [0], [1], [0, 0, 1, 1], [], []>} : vector<8x8xf32>, vector<8x512xf32>, vector<8x512xf32> -> vector<8x512xf32>
    %114 = vector.broadcast %17 : vector<8x1xf32> to vector<8x512xf32>
    %115 = arith.addf %113, %114 : vector<8x512xf32>
    %116 = arith.addf %115, %23 : vector<8x512xf32>
    %c0_36 = arith.constant 0 : index
    %c0_37 = arith.constant 0 : index
    %117 = vector.load %arg5[%c0_36, %c0_37] : memref<8x512xf32, #tpu.memory_space<vmem>>, vector<8x512xf32>
    tpu.vector_store %arg5[%c0_36, %c0_37], %116 {strides = array<i32>} : memref<8x512xf32, #tpu.memory_space<vmem>>, vector<8x512xf32>,
    return
  }
  func.func @transform_0(%arg0: i32) -> (i32, i32) {
    %c0_i32 = arith.constant 0 : i32
    %c0_i32_0 = arith.constant 0 : i32
    return %c0_i32, %arg0 : i32, i32
  }
  func.func @transform_1(%arg0: i32) -> (i32, i32) {
    %c0_i32 = arith.constant 0 : i32
    %c0_i32_0 = arith.constant 0 : i32
    %c0_i32_1 = arith.constant 0 : i32
    return %c0_i32, %c0_i32_0 : i32, i32
  }
  func.func @transform_2(%arg0: i32) -> (i32, i32) {
    %c0_i32 = arith.constant 0 : i32
    %c0_i32_0 = arith.constant 0 : i32
    %c0_i32_1 = arith.constant 0 : i32
    return %c0_i32, %c0_i32_0 : i32, i32
  }
  func.func @transform_3(%arg0: i32) -> (i32, i32) {
    %c0_i32 = arith.constant 0 : i32
    %c0_i32_0 = arith.constant 0 : i32
    %c0_i32_1 = arith.constant 0 : i32
    return %c0_i32, %c0_i32_0 : i32, i32
  }
  func.func @transform_4(%arg0: i32) -> (i32, i32) {
    %c0_i32 = arith.constant 0 : i32
    %c0_i32_0 = arith.constant 0 : i32
    return %c0_i32, %arg0 : i32, i32
  }
}

</mosaic_0001>

<llo_original>
// kernel: conv_groups_pallas.1
$region0: #{conv_groups_pallas.1}
  #allocation0 [shape = 'u32[]', space=smem, size = 0x4, offset = 0x4, fixed_abs, tag = 'smem constant byte address 0x4 - core index']
  #allocation1 [shape = 'u32[72,128]{1,0:T(1,128)}', space=vmem, size = 0x9000, scoped, tag = 'internal scratch']
  %s0 = inlined_call_operand.vmem [shape: f32[8,512], index: 0, kind: input, shape index: {}]
  %s1 = inlined_call_operand.vmem [shape: f32[8,72], index: 1, kind: input, shape index: {}]
  %s2 = inlined_call_operand.vmem [shape: f32[8,8], index: 2, kind: input, shape index: {}]
  %s3 = inlined_call_operand.vmem [shape: f32[8,5], index: 3, kind: input, shape index: {}]
  %s4 = inlined_call_operand.vmem [shape: f32[8,512], index: 4, kind: output, shape index: {}]
  %s5 = sld [smem:[#allocation0]]
  $region26: #{conv_groups_pallas.1} parent=0
    _
  %s7 = ssub.s32 1, %s5
  %s8 = scalar_select 0, %s7, %s5
  // Predicated region
  $region2: #{conv_groups_pallas.1} parent=0 // pred_check
    _
  $region3: #{conv_groups_pallas.1} parent=0 // pred_check_branch
    %10 = sbr.rel (0) target = $region5
  $region4: #{conv_groups_pallas.1} parent=0 // pred_region
    _
  $region5: #{conv_groups_pallas.1} parent=0 // pred_fallthru
    _
  // Predicated region
  $region6: #{conv_groups_pallas.1} parent=0 // pred_check
    _
  $region7: #{conv_groups_pallas.1} parent=0 // pred_check_branch
    %12 = sbr.rel (0) target = $region9
  $region8: #{conv_groups_pallas.1} parent=0 // pred_region
    _
  $region9: #{conv_groups_pallas.1} parent=0 // pred_fallthru
    _
  // Predicated region
  $region10: #{conv_groups_pallas.1} parent=0 // pred_check
    _
  $region11: #{conv_groups_pallas.1} parent=0 // pred_check_branch
    %14 = sbr.rel (0) target = $region13
  $region12: #{conv_groups_pallas.1} parent=0 // pred_region
    _
  $region13: #{conv_groups_pallas.1} parent=0 // pred_fallthru
    _
  // Predicated region
  $region14: #{conv_groups_pallas.1} parent=0 // pred_check
    _
  $region15: #{conv_groups_pallas.1} parent=0 // pred_check_branch
    %16 = sbr.rel (0) target = $region17
  $region16: #{conv_groups_pallas.1} parent=0 // pred_region
    _
  $region17: #{conv_groups_pallas.1} parent=0 // pred_fallthru
    _
  %v17 = vlaneseq
  %v18 = vand.u32 %v17, 127
  %v19 = vadd.s32 %v18, 128
  %v20 = vadd.s32 %v18, 256
  %v21 = vadd.s32 %v18, 384
  %v22 = vand.u32 %v18, 255
  %v23 = vand.u32 %v19, 255
  %v24 = vand.u32 %v20, 255
  %v25 = vand.u32 %v21, 255
  %vm26 = vcmp.lt.s32.totalorder %v22, 16
  %vm27 = vcmp.lt.s32.totalorder %v23, 16
  %vm28 = vcmp.lt.s32.totalorder %v24, 16
  %vm29 = vcmp.lt.s32.totalorder %v25, 16
  %vm30 = vcmp.ge.s32.totalorder %v22, 240
  %vm31 = vcmp.ge.s32.totalorder %v23, 240
  %vm32 = vcmp.ge.s32.totalorder %v24, 240
  %vm33 = vcmp.ge.s32.totalorder %v25, 240
  %v34 = vand.u32 %v22, 15
  %v35 = vand.u32 %v23, 15
  %v36 = vand.u32 %v24, 15
  %v37 = vand.u32 %v25, 15
  %vm38 = vcmp.eq.s32.totalorder %v34, 0
  %vm39 = vcmp.eq.s32.totalorder %v35, 0
  %vm40 = vcmp.eq.s32.totalorder %v36, 0
  %vm41 = vcmp.eq.s32.totalorder %v37, 0
  %vm42 = vcmp.eq.s32.totalorder %v34, 15
  %vm43 = vcmp.eq.s32.totalorder %v35, 15
  %vm44 = vcmp.eq.s32.totalorder %v36, 15
  %vm45 = vcmp.eq.s32.totalorder %v37, 15
  %v46 = vld [vmem:[%s3] sm:$0xff]
  %v47 = vlaneseq
  %v48 = vshrl.u32 %v47, 7
  %v49 = vand.u32 %v48, 3
  %vm50 = vcmp.lt.s32.totalorder %v49, 2
  %v51 = vld [vmem:[%s0] sm:$0xff]
  %v52 = vld [vmem:[%s0 + $0x8] sm:$0xff]
  %v53 = vld [vmem:[%s0 + $0x10] sm:$0xff]
  %v54 = vld [vmem:[%s0 + $0x18] sm:$0xff]
  %55 = vrot.lane.b32.xlu0 %v51, 16
  %v56 = vpop.permute.xlu0 %55
  %57 = vrot.lane.b32.xlu0 %v52, 16
  %v58 = vpop.permute.xlu0 %57
  %59 = vrot.lane.b32.xlu0 %v53, 16
  %v60 = vpop.permute.xlu0 %59
  %61 = vrot.lane.b32.xlu0 %v54, 16
  %v62 = vpop.permute.xlu0 %61
  %vm63 = vcmp.lt.s32.totalorder %v18, 16
  %v64 = vsel %vm63, %v60, %v62
  %v65 = vsel %vm63, %v58, %v60
  %v66 = vsel %vm63, %v56, %v58
  %v67 = vsel %vm63, %v62, %v56
  %68 = vrot.lane.b32.xlu0 %v51, 112
  %v69 = vpop.permute.xlu0 %68
  %70 = vrot.lane.b32.xlu0 %v52, 112
  %v71 = vpop.permute.xlu0 %70
  %72 = vrot.lane.b32.xlu0 %v53, 112
  %v73 = vpop.permute.xlu0 %72
  %74 = vrot.lane.b32.xlu0 %v54, 112
  %v75 = vpop.permute.xlu0 %74
  %vm76 = vcmp.lt.s32.totalorder %v18, 112
  %v77 = vsel %vm76, %v73, %v75
  %v78 = vsel %vm76, %v71, %v73
  %v79 = vsel %vm76, %v69, %v71
  %v80 = vsel %vm76, %v75, %v69
  %v81 = vsel %vm26, %v79, %v67
  %v82 = vsel %vm27, %v78, %v66
  %v83 = vsel %vm28, %v77, %v65
  %v84 = vsel %vm29, %v80, %v64
  %v85 = vsel %vm30, %v67, %v79
  %v86 = vsel %vm31, %v66, %v78
  %v87 = vsel %vm32, %v65, %v77
  %v88 = vsel %vm33, %v64, %v80
  %89 = vrot.lane.b32.xlu0 %v81, 1
  %v90 = vpop.permute.xlu0 %89
  %91 = vrot.lane.b32.xlu0 %v82, 1
  %v92 = vpop.permute.xlu0 %91
  %93 = vrot.lane.b32.xlu0 %v83, 1
  %v94 = vpop.permute.xlu0 %93
  %95 = vrot.lane.b32.xlu0 %v84, 1
  %v96 = vpop.permute.xlu0 %95
  %vm97 = vcmp.lt.s32.totalorder %v18, 1
  %v98 = vsel %vm97, %v94, %v96
  %v99 = vsel %vm97, %v92, %v94
  %v100 = vsel %vm97, %v90, %v92
  %v101 = vsel %vm97, %v96, %v90
  %102 = vrot.lane.b32.xlu0 %v81, 127
  %v103 = vpop.permute.xlu0 %102
  %104 = vrot.lane.b32.xlu0 %v82, 127
  %v105 = vpop.permute.xlu0 %104
  %106 = vrot.lane.b32.xlu0 %v83, 127
  %v107 = vpop.permute.xlu0 %106
  %108 = vrot.lane.b32.xlu0 %v84, 127
  %v109 = vpop.permute.xlu0 %108
  %vm110 = vcmp.lt.s32.totalorder %v18, 127
  %v111 = vsel %vm110, %v107, %v109
  %v112 = vsel %vm110, %v105, %v107
  %v113 = vsel %vm110, %v103, %v105
  %v114 = vsel %vm110, %v109, %v103
  %v115 = vsel %vm38, %v113, %v101
  %v116 = vsel %vm39, %v112, %v100
  %v117 = vsel %vm40, %v111, %v99
  %v118 = vsel %vm41, %v114, %v98
  %v119 = vsel %vm42, %v101, %v113
  %v120 = vsel %vm43, %v100, %v112
  %v121 = vsel %vm44, %v99, %v111
  %v122 = vsel %vm45, %v98, %v114
  %123 = vrot.lane.b32.xlu0 %v51, 1
  %v124 = vpop.permute.xlu0 %123
  %125 = vrot.lane.b32.xlu0 %v52, 1
  %v126 = vpop.permute.xlu0 %125
  %127 = vrot.lane.b32.xlu0 %v53, 1
  %v128 = vpop.permute.xlu0 %127
  %129 = vrot.lane.b32.xlu0 %v54, 1
  %v130 = vpop.permute.xlu0 %129
  %v131 = vsel %vm97, %v128, %v130
  %v132 = vsel %vm97, %v126, %v128
  %v133 = vsel %vm97, %v124, %v126
  %v134 = vsel %vm97, %v130, %v124
  %135 = vrot.lane.b32.xlu0 %v51, 127
  %v136 = vpop.permute.xlu0 %135
  %137 = vrot.lane.b32.xlu0 %v52, 127
  %v138 = vpop.permute.xlu0 %137
  %139 = vrot.lane.b32.xlu0 %v53, 127
  %v140 = vpop.permute.xlu0 %139
  %141 = vrot.lane.b32.xlu0 %v54, 127
  %v142 = vpop.permute.xlu0 %141
  %v143 = vsel %vm110, %v140, %v142
  %v144 = vsel %vm110, %v138, %v140
  %v145 = vsel %vm110, %v136, %v138
  %v146 = vsel %vm110, %v142, %v136
  %v147 = vsel %vm38, %v145, %v134
  %v148 = vsel %vm39, %v144, %v133
  %v149 = vsel %vm40, %v143, %v132
  %v150 = vsel %vm41, %v146, %v131
  %v151 = vsel %vm42, %v134, %v145
  %v152 = vsel %vm43, %v133, %v144
  %v153 = vsel %vm44, %v132, %v143
  %v154 = vsel %vm45, %v131, %v146
  %155 = vrot.lane.b32.xlu0 %v85, 1
  %v156 = vpop.permute.xlu0 %155
  %157 = vrot.lane.b32.xlu0 %v86, 1
  %v158 = vpop.permute.xlu0 %157
  %159 = vrot.lane.b32.xlu0 %v87, 1
  %v160 = vpop.permute.xlu0 %159
  %161 = vrot.lane.b32.xlu0 %v88, 1
  %v162 = vpop.permute.xlu0 %161
  %v163 = vsel %vm97, %v160, %v162
  %v164 = vsel %vm97, %v158, %v160
  %v165 = vsel %vm97, %v156, %v158
  %v166 = vsel %vm97, %v162, %v156
  %167 = vrot.lane.b32.xlu0 %v85, 127
  %v168 = vpop.permute.xlu0 %167
  %169 = vrot.lane.b32.xlu0 %v86, 127
  %v170 = vpop.permute.xlu0 %169
  %171 = vrot.lane.b32.xlu0 %v87, 127
  %v172 = vpop.permute.xlu0 %171
  %173 = vrot.lane.b32.xlu0 %v88, 127
  %v174 = vpop.permute.xlu0 %173
  %v175 = vsel %vm110, %v172, %v174
  %v176 = vsel %vm110, %v170, %v172
  %v177 = vsel %vm110, %v168, %v170
  %v178 = vsel %vm110, %v174, %v168
  %v179 = vsel %vm38, %v177, %v166
  %v180 = vsel %vm39, %v176, %v165
  %v181 = vsel %vm40, %v175, %v164
  %v182 = vsel %vm41, %v178, %v163
  %v183 = vsel %vm42, %v166, %v177
  %v184 = vsel %vm43, %v165, %v176
  %v185 = vsel %vm44, %v164, %v175
  %v186 = vsel %vm45, %v163, %v178
  %v187 = vld [vmem:[%s1] sm:$0xff]
  %189 = vset.pattern.permute.xlu0 0
  %190 = vperm.xlu0 %189, %v46
  %v191 = vpop.permute.xlu0 %190
  %vm193 = vcmask 588800
  %v195 = vsel %vm193, %v187, 0
  %197 = vmatpush.msra.mxu0 0.0
  %198 = vmatpush.msra.mxu0 0.0
  %199 = vmatpush.msra.mxu0 0.0
  %200 = vmatpush.msra.mxu0 0.0
  %201 = vmatpush.msra.mxu0 0.0
  %202 = vmatpush.msra.mxu0 0.0
  %203 = vmatpush.msra.mxu0 0.0
  %204 = vmatpush.msra.mxu0 %v183
  %205 = vmatpush.msra.mxu0 %v85
  %206 = vmatpush.msra.mxu0 %v179
  %207 = vmatpush.msra.mxu0 %v151
  %208 = vmatpush.msra.mxu0 %v51
  %209 = vmatpush.msra.mxu0 %v147
  %210 = vmatpush.msra.mxu0 %v119
  %211 = vmatpush.msra.mxu0 %v81
  %212 = vmatpush.msra.mxu0 %v115
  %213 = vmatmul.f32.gmra.mxu0 %v195
  %v214 = vpop.f32.mrf.mxu0
  %v215 = vadd.f32 %v191, %v214
  %216 = vdwg.mxu0
  %217 = vmatpush.msra.mxu0 0.0
  %218 = vmatpush.msra.mxu0 0.0
  %219 = vmatpush.msra.mxu0 0.0
  %220 = vmatpush.msra.mxu0 0.0
  %221 = vmatpush.msra.mxu0 0.0
  %222 = vmatpush.msra.mxu0 0.0
  %223 = vmatpush.msra.mxu0 0.0
  %224 = vmatpush.msra.mxu0 %v184
  %225 = vmatpush.msra.mxu0 %v86
  %226 = vmatpush.msra.mxu0 %v180
  %227 = vmatpush.msra.mxu0 %v152
  %228 = vmatpush.msra.mxu0 %v52
  %229 = vmatpush.msra.mxu0 %v148
  %230 = vmatpush.msra.mxu0 %v120
  %231 = vmatpush.msra.mxu0 %v82
  %232 = vmatpush.msra.mxu0 %v116
  %233 = vmatmul.f32.gmra.mxu0 %v195
  %v234 = vpop.f32.mrf.mxu0
  %v235 = vadd.f32 %v191, %v234
  %236 = vdwg.mxu0
  %237 = vmatpush.msra.mxu0 0.0
  %238 = vmatpush.msra.mxu0 0.0
  %239 = vmatpush.msra.mxu0 0.0
  %240 = vmatpush.msra.mxu0 0.0
  %241 = vmatpush.msra.mxu0 0.0
  %242 = vmatpush.msra.mxu0 0.0
  %243 = vmatpush.msra.mxu0 0.0
  %244 = vmatpush.msra.mxu0 %v185
  %245 = vmatpush.msra.mxu0 %v87
  %246 = vmatpush.msra.mxu0 %v181
  %247 = vmatpush.msra.mxu0 %v153
  %248 = vmatpush.msra.mxu0 %v53
  %249 = vmatpush.msra.mxu0 %v149
  %250 = vmatpush.msra.mxu0 %v121
  %251 = vmatpush.msra.mxu0 %v83
  %252 = vmatpush.msra.mxu0 %v117
  %253 = vmatmul.f32.gmra.mxu0 %v195
  %v254 = vpop.f32.mrf.mxu0
  %v255 = vadd.f32 %v191, %v254
  %256 = vdwg.mxu0
  %257 = vmatpush.msra.mxu0 0.0
  %258 = vmatpush.msra.mxu0 0.0
  %259 = vmatpush.msra.mxu0 0.0
  %260 = vmatpush.msra.mxu0 0.0
  %261 = vmatpush.msra.mxu0 0.0
  %262 = vmatpush.msra.mxu0 0.0
  %263 = vmatpush.msra.mxu0 0.0
  %264 = vmatpush.msra.mxu0 %v186
  %265 = vmatpush.msra.mxu0 %v88
  %266 = vmatpush.msra.mxu0 %v182
  %267 = vmatpush.msra.mxu0 %v154
  %268 = vmatpush.msra.mxu0 %v54
  %269 = vmatpush.msra.mxu0 %v150
  %270 = vmatpush.msra.mxu0 %v122
  %271 = vmatpush.msra.mxu0 %v84
  %272 = vmatpush.msra.mxu0 %v118
  %273 = vmatmul.f32.gmra.mxu0 %v195
  %v274 = vpop.f32.mrf.mxu0
  %v275 = vadd.f32 %v191, %v274
  %276 = vdwg.mxu0
  %v277 = vadd.f32 %v215, %v235
  %278 = vadd.xlane.f32.xlu0 %v277
  %v279 = vpop.xlane.xlu0 %278
  %v280 = vmul.f32 %v215, %v215
  %v281 = vmul.f32 %v235, %v235
  %v282 = vadd.f32 %v280, %v281
  %283 = vadd.xlane.f32.xlu0 %v282
  %v284 = vpop.xlane.xlu0 %283
  %v285 = vmul.f32 %v279, 0.00390625
  %v286 = vmul.f32 %v284, 0.00390625
  %v287 = vmul.f32 %v285, %v285
  %v288 = vsub.f32 %v286, %v287
  %v289 = vmax.f32 %v288, 0.0
  %v290 = vadd.f32 %v289, 1e-05
  %v291 = vrsqrt.pop %v290
  %v292 = vmul.f32 %v291, %v290
  %v293 = vmul.f32 %v292, %v291
  %v294 = vmul.f32 0.5, %v293
  %v295 = vsub.f32 1.5, %v294
  %v296 = vmul.f32 %v291, %v295
  %vm297 = vweird.f32 %v290
  %vm298 = vweird.f32 %v291
  %vm299 = vmor %vm297, %vm298
  %v300 = vsel %vm299, %v291, %v296
  %v301 = vmul.f32 %v46, %v300
  %v302 = vsel %vm50, %v301, 1.0
  %v303 = vmul.f32 %v285, %v301
  %305 = vrot.lane.b32.xlu0 %v303, 1
  %v306 = vpop.permute.xlu0 %305
  %v308 = vsub.f32 %v46, %v306
  %v309 = vsel %vm50, %v308, 0.0
  %311 = vset.pattern.permute.xlu0 1
  %312 = vperm.xlu0 %311, %v302
  %v313 = vpop.permute.xlu0 %312
  %v315 = vmul.f32 %v215, %v313
  %v316 = vmul.f32 %v235, %v313
  %318 = vset.pattern.permute.xlu0 2
  %319 = vperm.xlu0 %318, %v309
  %v320 = vpop.permute.xlu0 %319
  %v322 = vadd.f32 %v315, %v320
  %v323 = vadd.f32 %v316, %v320
  %vm324 = vcmp.ge.f32.partialorder %v322, 0.0
  %vm325 = vcmp.ge.f32.partialorder %v323, 0.0
  %326 = vset.pattern.permute.xlu0 3
  %327 = vperm.xlu0 %326, %v46
  %v328 = vpop.permute.xlu0 %327
  %v330 = vmul.f32 %v328, %v322
  %v331 = vmul.f32 %v328, %v323
  %v332 = vsel %vm324, %v322, %v330
  %v333 = vsel %vm325, %v323, %v331
  %v334 = vadd.f32 %v255, %v275
  %335 = vadd.xlane.f32.xlu0 %v334
  %v336 = vpop.xlane.xlu0 %335
  %v337 = vmul.f32 %v255, %v255
  %v338 = vmul.f32 %v275, %v275
  %v339 = vadd.f32 %v337, %v338
  %340 = vadd.xlane.f32.xlu0 %v339
  %v341 = vpop.xlane.xlu0 %340
  %v342 = vmul.f32 %v336, 0.00390625
  %v343 = vmul.f32 %v341, 0.00390625
  %v344 = vmul.f32 %v342, %v342
  %v345 = vsub.f32 %v343, %v344
  %v346 = vmax.f32 %v345, 0.0
  %v347 = vadd.f32 %v346, 1e-05
  %v348 = vrsqrt.pop %v347
  %v349 = vmul.f32 %v348, %v347
  %v350 = vmul.f32 %v349, %v348
  %v351 = vmul.f32 0.5, %v350
  %v352 = vsub.f32 1.5, %v351
  %v353 = vmul.f32 %v348, %v352
  %vm354 = vweird.f32 %v347
  %vm355 = vweird.f32 %v348
  %vm356 = vmor %vm354, %vm355
  %v357 = vsel %vm356, %v348, %v353
  %v358 = vmul.f32 %v46, %v357
  %v359 = vsel %vm50, %v358, 1.0
  %v360 = vmul.f32 %v342, %v358
  %362 = vrot.lane.b32.xlu0 %v360, 1
  %v363 = vpop.permute.xlu0 %362
  %v365 = vsub.f32 %v46, %v363
  %v366 = vsel %vm50, %v365, 0.0
  %368 = vset.pattern.permute.xlu0 1
  %369 = vperm.xlu0 %368, %v359
  %v370 = vpop.permute.xlu0 %369
  %v372 = vmul.f32 %v255, %v370
  %v373 = vmul.f32 %v275, %v370
  %375 = vset.pattern.permute.xlu0 2
  %376 = vperm.xlu0 %375, %v366
  %v377 = vpop.permute.xlu0 %376
  %v379 = vadd.f32 %v372, %v377
  %v380 = vadd.f32 %v373, %v377
  %vm381 = vcmp.ge.f32.partialorder %v379, 0.0
  %vm382 = vcmp.ge.f32.partialorder %v380, 0.0
  %v383 = vmul.f32 %v328, %v379
  %v384 = vmul.f32 %v328, %v380
  %v385 = vsel %vm381, %v379, %v383
  %v386 = vsel %vm382, %v380, %v384
  %v387 = vld [vmem:[%s2] sm:$0xff]
  %388 = vset.pattern.permute.xlu0 4
  %389 = vperm.xlu0 %388, %v46
  %v390 = vpop.permute.xlu0 %389
  %vm392 = vcmask 64512
  %v394 = vsel %vm392, %v387, 0
  %396 = vmatpush.msra.mxu0 0.0
  %397 = vmatpush.msra.mxu0 0.0
  %398 = vmatpush.msra.mxu0 0.0
  %399 = vmatpush.msra.mxu0 0.0
  %400 = vmatpush.msra.mxu0 0.0
  %401 = vmatpush.msra.mxu0 0.0
  %402 = vmatpush.msra.mxu0 0.0
  %403 = vmatpush.msra.mxu0 0.0
  %404 = vmatpush.msra.mxu0 0.0
  %405 = vmatpush.msra.mxu0 0.0
  %406 = vmatpush.msra.mxu0 0.0
  %407 = vmatpush.msra.mxu0 0.0
  %408 = vmatpush.msra.mxu0 0.0
  %409 = vmatpush.msra.mxu0 0.0
  %410 = vmatpush.msra.mxu0 0.0
  %411 = vmatpush.msra.mxu0 %v332
  %412 = vmatmul.f32.gmra.mxu0 %v394
  %v413 = vpop.f32.mrf.mxu0
  %v414 = vadd.f32 %v390, %v413
  %415 = vdwg.mxu0
  %416 = vmatpush.msra.mxu0 0.0
  %417 = vmatpush.msra.mxu0 0.0
  %418 = vmatpush.msra.mxu0 0.0
  %419 = vmatpush.msra.mxu0 0.0
  %420 = vmatpush.msra.mxu0 0.0
  %421 = vmatpush.msra.mxu0 0.0
  %422 = vmatpush.msra.mxu0 0.0
  %423 = vmatpush.msra.mxu0 0.0
  %424 = vmatpush.msra.mxu0 0.0
  %425 = vmatpush.msra.mxu0 0.0
  %426 = vmatpush.msra.mxu0 0.0
  %427 = vmatpush.msra.mxu0 0.0
  %428 = vmatpush.msra.mxu0 0.0
  %429 = vmatpush.msra.mxu0 0.0
  %430 = vmatpush.msra.mxu0 0.0
  %431 = vmatpush.msra.mxu0 %v333
  %432 = vmatmul.f32.gmra.mxu0 %v394
  %v433 = vpop.f32.mrf.mxu0
  %v434 = vadd.f32 %v390, %v433
  %435 = vdwg.mxu0
  %436 = vmatpush.msra.mxu0 0.0
  %437 = vmatpush.msra.mxu0 0.0
  %438 = vmatpush.msra.mxu0 0.0
  %439 = vmatpush.msra.mxu0 0.0
  %440 = vmatpush.msra.mxu0 0.0
  %441 = vmatpush.msra.mxu0 0.0
  %442 = vmatpush.msra.mxu0 0.0
  %443 = vmatpush.msra.mxu0 0.0
  %444 = vmatpush.msra.mxu0 0.0
  %445 = vmatpush.msra.mxu0 0.0
  %446 = vmatpush.msra.mxu0 0.0
  %447 = vmatpush.msra.mxu0 0.0
  %448 = vmatpush.msra.mxu0 0.0
  %449 = vmatpush.msra.mxu0 0.0
  %450 = vmatpush.msra.mxu0 0.0
  %451 = vmatpush.msra.mxu0 %v385
  %452 = vmatmul.f32.gmra.mxu0 %v394
  %v453 = vpop.f32.mrf.mxu0
  %v454 = vadd.f32 %v390, %v453
  %455 = vdwg.mxu0
  %456 = vmatpush.msra.mxu0 0.0
  %457 = vmatpush.msra.mxu0 0.0
  %458 = vmatpush.msra.mxu0 0.0
  %459 = vmatpush.msra.mxu0 0.0
  %460 = vmatpush.msra.mxu0 0.0
  %461 = vmatpush.msra.mxu0 0.0
  %462 = vmatpush.msra.mxu0 0.0
  %463 = vmatpush.msra.mxu0 0.0
  %464 = vmatpush.msra.mxu0 0.0
  %465 = vmatpush.msra.mxu0 0.0
  %466 = vmatpush.msra.mxu0 0.0
  %467 = vmatpush.msra.mxu0 0.0
  %468 = vmatpush.msra.mxu0 0.0
  %469 = vmatpush.msra.mxu0 0.0
  %470 = vmatpush.msra.mxu0 0.0
  %471 = vmatpush.msra.mxu0 %v386
  %472 = vmatmul.f32.gmra.mxu0 %v394
  %v473 = vpop.f32.mrf.mxu0
  %v474 = vadd.f32 %v390, %v473
  %475 = vdwg.mxu0
  %v476 = vadd.f32 %v414, %v51
  %v477 = vadd.f32 %v434, %v52
  %v478 = vadd.f32 %v454, %v53
  %v479 = vadd.f32 %v474, %v54
  %480 = vst [vmem:[%s4] sm:$0xff] %v476
  %481 = vst [vmem:[%s4 + $0x8] sm:$0xff] %v477
  %482 = vst [vmem:[%s4 + $0x10] sm:$0xff] %v478
  %483 = vst [vmem:[%s4 + $0x18] sm:$0xff] %v479
  // Predicated region
  $region18: #{conv_groups_pallas.1} parent=0 // pred_check
    _
  $region19: #{conv_groups_pallas.1} parent=0 // pred_check_branch
    %485 = sbr.rel (0) target = $region21
  $region20: #{conv_groups_pallas.1} parent=0 // pred_region
    _
  $region21: #{conv_groups_pallas.1} parent=0 // pred_fallthru
    _
  // Predicated region
  $region22: #{conv_groups_pallas.1} parent=0 // pred_check
    _
  $region23: #{conv_groups_pallas.1} parent=0 // pred_check_branch
    %487 = sbr.rel (0) target = $region25
  $region24: #{conv_groups_pallas.1} parent=0 // pred_region
    _
  $region25: #{conv_groups_pallas.1} parent=0 // pred_fallthru
    _

</llo_original>
